<compile_context>
chip_gen: v5e
topology: v5e:2x2
jax: 0.10.0
libtpu: 0.0.40
codegen_flags: <defaults>
</compile_context>

<pallas_src>
import jax
import jax.numpy as jnp
from jax.experimental import pallas as pl
from jax.experimental.pallas import tpu as pltpu


def _round_up(x: int, m: int) -> int:
    return (x + m - 1) // m * m


def _cdiv(a: int, b: int) -> int:
    return -(-a // b)


def _make_classifier_kernel(apply_sigmoid: bool, tf: int, lane_group: int = 4):
    nc = tf // 128  # number of 128-lane chunks per feature tile (static)

    def kernel(b_ref, x_ref, w_ref, o_ref, acc_ref):
        # grid = (batch_tile i, feature_tile k); k innermost (reduction axis).
        k = pl.program_id(1)

        @pl.when(k == 0)
        def _init():
            acc_ref[...] = jnp.zeros_like(acc_ref)

        # Weight tile for this k: the whole (nk, tf) weight is VMEM-resident
        # (constant block index), so this is a free dynamic sublane slice.
        w = w_ref[pl.ds(k, 1), :].astype(jnp.float32)          # (1, tf)

        # Pure-VPU inner loop: static 128-lane chunks of x*w added into the
        # (tb, 128) scratch; no per-step XLU reduce, no (tb, tf) temp.
        c = 0
        while c < nc:
            g = min(lane_group, nc - c)
            s = None
            for j in range(g):
                lo = (c + j) * 128
                xc = x_ref[:, lo:lo + 128].astype(jnp.float32)  # (tb, 128)
                wc = w[:, lo:lo + 128]                          # (1, 128)
                t = xc * wc
                s = t if s is None else s + t
            acc_ref[...] += s
            c += g

        @pl.when(k == pl.num_programs(1) - 1)
        def _finalize():
            # One XLU 128->1 reduce + sublane->lane relayout per batch tile.
            y = jnp.sum(acc_ref[...], axis=-1) + b_ref[0]       # (tb,)
            if apply_sigmoid:
                y = jax.nn.sigmoid(y)
            o_ref[...] = y[None, :]                             # lane-dense (1, tb)

    return kernel


def review_classifier_forward(x, weight, bias, apply_sigmoid=False,
                              block_batch=1024, block_features=4096):
    """Forward pass of ReviewClassifier.

    Args:
      x:      (batch, num_features) float32 or bfloat16
      weight: (1, num_features)      (PyTorch nn.Linear layout)
      bias:   (1,)
      apply_sigmoid: python bool flag
    Returns:
      (batch,) float32
    """
    batch, num_features = x.shape

    # Pad only to the (8, 128) hardware granule, then pick tile counts first so
    # the tiles evenly divide the (minimally) padded dims — no full-tile padding.
    pb8 = _round_up(batch, 8)
    pf128 = _round_up(num_features, 128)

    tb_cap = block_batch
    if pb8 >= 512:
        # Guarantee >= 2 batch tiles so the "parallel" axis spans both v7x TCs.
        tb_cap = min(tb_cap, max(256, _round_up(_cdiv(pb8, 2), 8)))
    nb = _cdiv(pb8, tb_cap)
    tb = _round_up(_cdiv(pb8, nb), 8)
    pb = nb * tb

    nk = _cdiv(pf128, block_features)
    tf = _round_up(_cdiv(pf128, nk), 128)
    pf = nk * tf

    if (pb, pf) != (batch, num_features):
        x = jnp.pad(x, ((0, pb - batch), (0, pf - num_features)))

    w_row = weight.reshape(1, num_features).astype(jnp.float32)
    if pf != num_features:
        w_row = jnp.pad(w_row, ((0, 0), (0, pf - num_features)))
    w_tiles = w_row.reshape(nk, tf)        # row k = feature tile k; stays VMEM-resident
    bias = bias.reshape(1).astype(jnp.float32)

    out = pl.pallas_call(
        _make_classifier_kernel(apply_sigmoid, tf),
        out_shape=jax.ShapeDtypeStruct((nb, 1, tb), jnp.float32),
        grid=(nb, nk),
        in_specs=[
            pl.BlockSpec(memory_space=pltpu.SMEM),               # bias scalar
            pl.BlockSpec((tb, tf), lambda i, k: (i, k)),          # x tile (streams HBM)
            pl.BlockSpec((nk, tf), lambda i, k: (0, 0)),          # weight, fetched once
        ],
        # Lane-dense output: tb on the lane axis, resident across the k axis.
        out_specs=pl.BlockSpec((None, 1, tb), lambda i, k: (i, 0, 0)),
        scratch_shapes=[pltpu.VMEM((tb, 128), jnp.float32)],      # per-tile accumulator
        compiler_params=pltpu.CompilerParams(
            dimension_semantics=("parallel", "arbitrary"),
            vmem_limit_bytes=48 * 1024 * 1024,
        ),
        cost_estimate=pl.CostEstimate(
            flops=2 * pb * pf,
            transcendentals=pb if apply_sigmoid else 0,
            bytes_accessed=int(x.dtype.itemsize) * pb * pf + 4 * pf + 4 * pb + 4,
        ),
    )(bias, x, w_tiles)

    # (nb, 1, tb) -> (pb,) -> drop padded rows, matching .squeeze() in PyTorch.
    return out.reshape(pb)[:batch]


if __name__ == "__main__":
    key = jax.random.PRNGKey(0)
    k_x, k_w, k_b, k_x2 = jax.random.split(key, 4)

    # Small shapes consistent with the module: (batch, num_features).
    batch, num_features = 8, 128
    x = jax.random.normal(k_x, (batch, num_features), dtype=jnp.float32)
    bound = 1.0 / (num_features ** 0.5)
    weight = jax.random.uniform(k_w, (1, num_features), jnp.float32, -bound, bound)
    bias = jax.random.uniform(k_b, (1,), jnp.float32, -bound, bound)

    y = jax.block_until_ready(review_classifier_forward(x, weight, bias, apply_sigmoid=False))
    y_sig = jax.block_until_ready(review_classifier_forward(x, weight, bias, apply_sigmoid=True))

    y_ref = (x @ weight.T + bias).reshape(batch)
    assert y.shape == (batch,)
    assert jnp.allclose(y, y_ref, atol=1e-4), "mismatch vs reference"
    assert jnp.allclose(y_sig, jax.nn.sigmoid(y_ref), atol=1e-4), "sigmoid mismatch"

    # bf16 input path (upcast happens in-kernel; no wrapper-side cast pass).
    y_bf = jax.block_until_ready(
        review_classifier_forward(x.astype(jnp.bfloat16), weight, bias, apply_sigmoid=False))
    assert jnp.allclose(y_bf, y_ref, atol=2e-2), "bf16 mismatch vs reference"

    # Ragged multi-tile case (nb>1, nk>1): exercises minimal (8,128) padding,
    # cross-step accumulation, and the dynamic resident-weight row slice.
    b2, f2 = 20, 500
    x2 = jax.random.normal(k_x2, (b2, f2), dtype=jnp.float32)
    bound2 = 1.0 / (f2 ** 0.5)
    w2 = jax.random.uniform(k_w, (1, f2), jnp.float32, -bound2, bound2)
    b2v = jax.random.uniform(k_b, (1,), jnp.float32, -bound2, bound2)
    y2 = jax.block_until_ready(review_classifier_forward(
        x2, w2, b2v, apply_sigmoid=True, block_batch=16, block_features=256))
    y2_ref = jax.nn.sigmoid((x2 @ w2.T + b2v).reshape(b2))
    assert y2.shape == (b2,)
    assert jnp.allclose(y2, y2_ref, atol=1e-4), "ragged mismatch vs reference"

    print("KERNEL_OK")
</pallas_src>

<mosaic_0001>
module attributes {stable_mosaic.version = 11 : i64} {
  func.func @kernel(%arg0: i32, %arg1: i32, %arg2: memref<1xf32, #tpu.memory_space<smem>>, %arg3: memref<8x128xf32, #tpu.memory_space<vmem>>, %arg4: memref<1x128xf32, #tpu.memory_space<vmem>>, %arg5: memref<1x1x8xf32, #tpu.memory_space<vmem>>, %arg6: memref<8x128xf32, #tpu.memory_space<vmem>>) attributes {dimension_semantics = [#tpu.dimension_semantics<parallel>, #tpu.dimension_semantics<arbitrary>], iteration_bounds = array<i64: 1, 1>, scalar_prefetch = 0 : i64, scratch_operands = 1 : i64, tpu.core_type = #tpu.core_type<tc>, window_params = [{transform_indices = @transform_0, window_bounds = array<i64: 1>}, {transform_indices = @transform_1, window_bounds = array<i64: 8, 128>}, {pipeline_mode = #tpu.pipeline_mode<synchronous>, transform_indices = @transform_2, window_bounds = array<i64: 1, 128>}, {transform_indices = @transform_3, window_bounds = array<i64: 1, 1, 8>}]} {
    %c0_i32 = arith.constant 0 : i32
    %0 = arith.cmpi eq, %arg1, %c0_i32 : i32
    %1 = arith.extui %0 : i1 to i32
    %c0_i32_0 = arith.constant 0 : i32
    %2 = arith.cmpi ne, %1, %c0_i32_0 : i32
    scf.if %2 {
      %cst = arith.constant 0.000000e+00 : f32
      %14 = vector.broadcast %cst : f32 to vector<8x128xf32>
      %c0_9 = arith.constant 0 : index
      %c0_10 = arith.constant 0 : index
      %15 = vector.load %arg6[%c0_9, %c0_10] : memref<8x128xf32, #tpu.memory_space<vmem>>, vector<8x128xf32>
      tpu.vector_store %arg6[%c0_9, %c0_10], %14 {strides = array<i32>} : memref<8x128xf32, #tpu.memory_space<vmem>>, vector<8x128xf32>,
    } else {
    }
    %3 = arith.index_cast %arg1 : i32 to index
    %c0 = arith.constant 0 : index
    %4 = vector.load %arg4[%3, %c0] : memref<1x128xf32, #tpu.memory_space<vmem>>, vector<1x128xf32>
    %c0_1 = arith.constant 0 : index
    %c0_2 = arith.constant 0 : index
    %5 = vector.load %arg3[%c0_1, %c0_2] : memref<8x128xf32, #tpu.memory_space<vmem>>, vector<8x128xf32>
    %6 = vector.broadcast %4 : vector<1x128xf32> to vector<8x128xf32>
    %7 = arith.mulf %5, %6 : vector<8x128xf32>
    %c0_3 = arith.constant 0 : index
    %c0_4 = arith.constant 0 : index
    %8 = vector.load %arg6[%c0_3, %c0_4] : memref<8x128xf32, #tpu.memory_space<vmem>>, vector<8x128xf32>
    %9 = arith.addf %8, %7 : vector<8x128xf32>
    %c0_5 = arith.constant 0 : index
    %c0_6 = arith.constant 0 : index
    %10 = vector.load %arg6[%c0_5, %c0_6] : memref<8x128xf32, #tpu.memory_space<vmem>>, vector<8x128xf32>
    tpu.vector_store %arg6[%c0_5, %c0_6], %9 {strides = array<i32>} : memref<8x128xf32, #tpu.memory_space<vmem>>, vector<8x128xf32>,
    %c0_i32_7 = arith.constant 0 : i32
    %11 = arith.cmpi eq, %arg1, %c0_i32_7 : i32
    %12 = arith.extui %11 : i1 to i32
    %c0_i32_8 = arith.constant 0 : i32
    %13 = arith.cmpi ne, %12, %c0_i32_8 : i32
    scf.if %13 {
      %c0_9 = arith.constant 0 : index
      %c0_10 = arith.constant 0 : index
      %14 = vector.load %arg6[%c0_9, %c0_10] : memref<8x128xf32, #tpu.memory_space<vmem>>, vector<8x128xf32>
      %cst = arith.constant dense<0.000000e+00> : vector<8xf32>
      %15 = vector.multi_reduction <add>, %14, %cst [1] : vector<8x128xf32> to vector<8xf32>
      %c0_11 = arith.constant 0 : index
      %16 = memref.load %arg2[%c0_11] : memref<1xf32, #tpu.memory_space<smem>>
      %17 = vector.broadcast %16 : f32 to vector<8xf32>
      %18 = arith.addf %15, %17 : vector<8xf32>
      %19 = vector.shape_cast %18 : vector<8xf32> to vector<1x8xf32>
      %c0_12 = arith.constant 0 : index
      %c0_13 = arith.constant 0 : index
      %c0_14 = arith.constant 0 : index
      %20 = vector.load %arg5[%c0_12, %c0_13, %c0_14] : memref<1x1x8xf32, #tpu.memory_space<vmem>>, vector<1x1x8xf32>
      %21 = vector.shape_cast %20 : vector<1x1x8xf32> to vector<1x8xf32>
      %22 = vector.shape_cast %19 : vector<1x8xf32> to vector<1x1x8xf32>
      tpu.vector_store %arg5[%c0_12, %c0_13, %c0_14], %22 {strides = array<i32>} : memref<1x1x8xf32, #tpu.memory_space<vmem>>, vector<1x1x8xf32>,
    } else {
    }
    return
  }
  func.func @transform_0(%arg0: i32, %arg1: i32) -> i32 {
    %c0_i32 = arith.constant 0 : i32
    %c0_i32_0 = arith.constant 0 : i32
    return %c0_i32 : i32
  }
  func.func @transform_1(%arg0: i32, %arg1: i32) -> (i32, i32) {
    %c0_i32 = arith.constant 0 : i32
    return %arg0, %arg1 : i32, i32
  }
  func.func @transform_2(%arg0: i32, %arg1: i32) -> (i32, i32) {
    %c0_i32 = arith.constant 0 : i32
    %c0_i32_0 = arith.constant 0 : i32
    %c0_i32_1 = arith.constant 0 : i32
    return %c0_i32, %c0_i32_0 : i32, i32
  }
  func.func @transform_3(%arg0: i32, %arg1: i32) -> (i32, i32, i32) {
    %c0_i32 = arith.constant 0 : i32
    %c0_i32_0 = arith.constant 0 : i32
    %c0_i32_1 = arith.constant 0 : i32
    return %arg0, %c0_i32, %c0_i32_0 : i32, i32, i32
  }
}

</mosaic_0001>

<llo_original>
// kernel: tpu_custom_call.1
$region0: #{tpu_custom_call.1}
  #allocation0 [shape = 'u32[]', space=smem, size = 0x4, offset = 0x4, fixed_abs, tag = 'smem constant byte address 0x4 - core index']
  #allocation1 [shape = 'u32[72,128]{1,0:T(1,128)}', space=vmem, size = 0x9000, scoped, tag = 'internal scratch']
  #allocation2 [shape = 'f32[8,128]{1,0:T(8,128)}', space=vmem, size = 0x1000, scoped, tag = 'scratch operand']
  #allocation3 [shape = 'f32[1]{0:T(128)S(6)}', space=smem, size = 0x200, scoped, tag = 'scoped memory for tpu_custom_call.1']
  %s0 = inlined_call_operand.<no memory space> [shape: f32[1], index: 0, kind: input, shape index: {}]
  %s1 = inlined_call_operand.hbm [shape: f32[8,128], index: 1, kind: input, shape index: {}]
  %s2 = inlined_call_operand.vmem [shape: f32[1,128], index: 2, kind: input, shape index: {}]
  %s3 = inlined_call_operand.hbm [shape: f32[1,1,8], index: 3, kind: output, shape index: {}]
  %s4 = sld [smem:[#allocation0]]
  $region34: #{tpu_custom_call.1} parent=0
    _
  %s6 = ssub.s32 1, %s4
  %s7 = scalar_select 0, %s6, %s4
  %8 = sst [smem:[#allocation3]] %s0
  $region1: #{tpu_custom_call.1} parent=0
    #allocation4 [shape = 'u8[4096]{0}', space=vmem, size = 0x1000, scoped, tag = 'input window, operand 1, single buffered']
    #allocation5 [shape = 's32[1]{0}', space=sflag, size = 0x4, scoped, tag = 'scoped memory for tpu_custom_call.1']
    #allocation6 [shape = 's32[1]{0}', space=sflag, size = 0x4, scoped, tag = 'scoped memory for tpu_custom_call.1']
    #allocation7 [shape = 'u8[512]{0}', space=vmem, size = 0x400, scoped, tag = 'output window, operand 0, single buffered']
    %9 = vsyncpa [#allocation5], 0
    %10 = vsyncpa [#allocation6], 0
    // Predicated region
    $region2: #{tpu_custom_call.1} parent=1 // pred_check
      _
    $region3: #{tpu_custom_call.1} parent=1 // pred_check_branch
      %12 = sbr.rel (0) target = $region5
    $region4: #{tpu_custom_call.1} parent=1 // pred_region
      _
    $region5: #{tpu_custom_call.1} parent=1 // pred_fallthru
      _
    // Predicated region
    $region6: #{tpu_custom_call.1} parent=1 // pred_check
      _
    $region7: #{tpu_custom_call.1} parent=1 // pred_check_branch
      %14 = sbr.rel (0) target = $region9
    $region8: #{tpu_custom_call.1} parent=1 // pred_region
      %16 = vsyncadd [#allocation5], 0
      %s18 = sshll.u32 %s1, 4
      %s19 = int_to_ptr.hbm [resolvable:$true] %s18
      %s20 = sshll.u32 [#allocation4], 4
      %s21 = int_to_ptr.vmem [resolvable:$true] %s20
      %23 = dma.hbm_to_vmem [thread:$0]  %s19, 128, %s21, [#allocation5]
    $region9: #{tpu_custom_call.1} parent=1 // pred_fallthru
      _
    // Predicated region
    $region10: #{tpu_custom_call.1} parent=1 // pred_check
      _
    $region11: #{tpu_custom_call.1} parent=1 // pred_check_branch
      %25 = sbr.rel (0) target = $region13
    $region12: #{tpu_custom_call.1} parent=1 // pred_region
      _
    $region13: #{tpu_custom_call.1} parent=1 // pred_fallthru
      _
    // Predicated region
    $region14: #{tpu_custom_call.1} parent=1 // pred_check
      _
    $region15: #{tpu_custom_call.1} parent=1 // pred_check_branch
      %27 = sbr.rel (0) target = $region17
    $region16: #{tpu_custom_call.1} parent=1 // pred_region
      %29 = dma.done [#allocation5], 128
    $region17: #{tpu_custom_call.1} parent=1 // pred_fallthru
      _
    %p30 = scmp.eq.s32.totalorder 0, 0
    // Predicated region
    $region18: #{tpu_custom_call.1} parent=1 // pred_check
      %p31 = pneg %p30
    $region19: #{tpu_custom_call.1} parent=1 // pred_check_branch
      %33 = sbr.rel (%p31) target = $region21
    $region20: #{tpu_custom_call.1} parent=1 // pred_region
      %34 = vst [vmem:[#allocation2] sm:$0xff] 0.0
    $region21: #{tpu_custom_call.1} parent=1 // pred_fallthru
      _
    %v35 = vld [vmem:[%s2] sm:$0x1]
    %v36 = vld [vmem:[#allocation4] sm:$0xff]
    %v38 = vperm.slane %v35, 0
    %v40 = vmul.f32 %v36, %v38
    %v41 = vld [vmem:[#allocation2] sm:$0xff]
    %v42 = vadd.f32 %v41, %v40
    %43 = vst [vmem:[#allocation2] sm:$0xff] %v42
    // Predicated region
    $region22: #{tpu_custom_call.1} parent=1 // pred_check
      %p44 = pneg %p30
    $region23: #{tpu_custom_call.1} parent=1 // pred_check_branch
      %46 = sbr.rel (%p44) target = $region25
    $region24: #{tpu_custom_call.1} parent=1 // pred_region
      %v47 = vld [vmem:[#allocation2] sm:$0xff]
      %48 = vadd.xlane.f32.xlu0 %v47
      %v49 = vpop.xlane.xlu0 %48
      %s50 = sld [smem:[#allocation3]]
      %v51 = vstv %s50
      %v52 = vadd.f32 %v49, %v51
      %v54 = vlaneseq
      %v55 = vand.u32 %v54, 127
      %v56 = vperm.slane %v52, %v55
      %vm58 = vcmask 57344
      %59 = vst.msk [vmem:[#allocation7] sm:$0x1] %vm58, %v56
    $region25: #{tpu_custom_call.1} parent=1 // pred_fallthru
      _
    // Predicated region
    $region26: #{tpu_custom_call.1} parent=1 // pred_check
      _
    $region27: #{tpu_custom_call.1} parent=1 // pred_check_branch
      %61 = sbr.rel (0) target = $region29
    $region28: #{tpu_custom_call.1} parent=1 // pred_region
      %63 = vsyncadd [#allocation6], 0
      %s65 = sshll.u32 [#allocation7], 4
      %s66 = int_to_ptr.vmem [resolvable:$true] %s65
      %s67 = sshll.u32 %s3, 4
      %s68 = int_to_ptr.hbm [resolvable:$true] %s67
      %70 = dma.vmem_to_hbm [thread:$0]  %s66, 16, %s68, [#allocation6]
    $region29: #{tpu_custom_call.1} parent=1 // pred_fallthru
      _
    // Predicated region
    $region30: #{tpu_custom_call.1} parent=1 // pred_check
      _
    $region31: #{tpu_custom_call.1} parent=1 // pred_check_branch
      %72 = sbr.rel (0) target = $region33
    $region32: #{tpu_custom_call.1} parent=1 // pred_region
      %74 = dma.done [#allocation6], 16
    $region33: #{tpu_custom_call.1} parent=1 // pred_fallthru
      _
    %75 = vsyncpa [#allocation5], 1
    %76 = vsyncpa [#allocation6], 1

</llo_original>
